<compile_context>
chip_gen: v5e
topology: v5e:2x2
jax: 0.10.0
libtpu: 0.0.40
codegen_flags: <defaults>
</compile_context>

<pallas_src>
import jax
import jax.numpy as jnp
from jax.experimental import pallas as pl
from jax.experimental.pallas import tpu as pltpu

B, CIN, H, W = 2, 256, 8, 8
COUT = 4
HW = H * W                 # 64
HID = COUT * HW            # 256
EPS = 1e-5

# MXU operand dtype. jnp.float32 keeps the run numerically tight vs. the f32 reference (1e-3).
# On v6e/v7x set to jnp.bfloat16 (halves x/w1_t DMA bytes, single-pass bf16 MXU); BN statistics,
# scale/shift, rsqrt and both matmul accumulators stay f32 either way.
MXU_DTYPE = jnp.float32


def value_head_kernel(x_ref, wc_ref, pk_ref, w1t_ref, o_ref):
    # x:   [B, CIN, H*W]   NCHW input with spatial flattened (free reshape in the wrapper)
    # wc:  [COUT, CIN]     1x1 conv weight (conv bias omitted: cancels under training-mode BN)
    # pk:  [8, HID] f32    packed small params: rows 0..COUT-1 -> col0=gamma, col1=beta;
    #                      row COUT = b1; row COUT+1 = w2; row COUT+2, col0 = b2
    # w1t: [HID, HID]      fc1 weight transposed; row index = PyTorch flatten index c*H*W + s
    # o:   [B, 1] f32
    batch = x_ref.shape[0]
    cout = wc_ref.shape[0]
    hw = x_ref.shape[2]

    # ---- 1x1 conv, channel-major; merge batches along lanes: y[:, b*hw + s] ----------------
    wc = wc_ref[...]
    y = jnp.concatenate(
        [jnp.dot(wc, x_ref[b], preferred_element_type=jnp.float32) for b in range(batch)],
        axis=1)                                                     # [COUT, B*HW] f32

    # ---- BatchNorm2d, training mode (biased stats over B,H,W); one-pass variance -----------
    inv_n = 1.0 / float(y.shape[1])
    mean = jnp.sum(y, axis=1, keepdims=True) * inv_n                # [COUT, 1]
    var = jnp.sum(y * y, axis=1, keepdims=True) * inv_n - mean * mean
    gamma = pk_ref[0:cout, 0:1]                                     # [COUT, 1]
    beta = pk_ref[0:cout, 1:2]                                      # [COUT, 1]
    scale = gamma * jax.lax.rsqrt(var + EPS)
    shift = beta - scale * mean
    act = jnp.maximum(scale * y + shift, 0.0)                       # [COUT, B*HW] f32 (ReLU)

    # ---- fc1 as a single K=256 MXU matmul ---------------------------------------------------
    # Build A[b, c*hw + s] = act[c, b*hw + s] (PyTorch nn.Flatten channel-major order) via
    # lane/sublane concats of 64-wide row slices — a ~2 KiB in-VMEM relayout, then one dot.
    rows = []
    for b in range(batch):
        rows.append(jnp.concatenate(
            [act[c:c + 1, b * hw:(b + 1) * hw] for c in range(cout)], axis=1))   # [1, HID]
    a_mat = jnp.concatenate(rows, axis=0).astype(w1t_ref.dtype)     # [B, HID]

    b1v = pk_ref[cout:cout + 1, :]                                   # [1, HID]
    hs = jnp.dot(a_mat, w1t_ref[...], preferred_element_type=jnp.float32) + b1v  # [B, HID] f32

    # ---- fc2: VPU broadcast-mul + lane reduction (skip an N=1 MXU push); single store -------
    w2v = pk_ref[cout + 1:cout + 2, :]                               # [1, HID]
    b2v = pk_ref[cout + 2:cout + 3, 0:1]                             # [1, 1]
    o_ref[...] = jnp.sum(hs * w2v, axis=-1, keepdims=True) + b2v


def value_head_forward(x_nchw, params):
    b, cin, h, w = x_nchw.shape
    # Free reshape (no data movement, no transpose); cast is a no-op in the default f32 mode.
    x3d = x_nchw.reshape(b, cin, h * w).astype(params["w1_t"].dtype)

    hid = params["w1_t"].shape[1]
    cout = params["wc"].shape[0]
    flops = 2 * b * h * w * cin * cout + 2 * b * hid * hid + 2 * b * hid
    bytes_accessed = (x3d.size * x3d.dtype.itemsize
                      + params["wc"].size * params["wc"].dtype.itemsize
                      + params["w1_t"].size * params["w1_t"].dtype.itemsize
                      + params["packed"].size * 4 + b * 4)

    vmem = pl.BlockSpec(memory_space=pltpu.MemorySpace.VMEM)
    return pl.pallas_call(
        value_head_kernel,
        out_shape=jax.ShapeDtypeStruct((b, 1), jnp.float32),
        in_specs=[vmem, vmem, vmem, vmem],
        out_specs=vmem,
        cost_estimate=pl.CostEstimate(flops=flops, transcendentals=cout,
                                      bytes_accessed=bytes_accessed),
    )(x3d, params["wc"], params["packed"], params["w1_t"])


def reference_forward(x_nchw, raw):
    """Pure-JAX f32 reference mirroring the PyTorch forward (training-mode BN, with conv bias)."""
    wc, bc, gamma, beta, w1, b1, w2, b2 = raw
    y = jnp.einsum("bchw,oc->bohw", x_nchw, wc) + bc[None, :, None, None]
    mean = jnp.mean(y, axis=(0, 2, 3), keepdims=True)
    var = jnp.mean((y - mean) ** 2, axis=(0, 2, 3), keepdims=True)
    y = (y - mean) * jax.lax.rsqrt(var + EPS)
    y = jnp.maximum(gamma[None, :, None, None] * y + beta[None, :, None, None], 0.0)
    z = y.reshape(y.shape[0], -1)          # channel-major flatten (PyTorch nn.Flatten)
    hmat = z @ w1.T + b1
    return hmat @ w2.T + b2


if __name__ == "__main__":
    key = jax.random.PRNGKey(0)
    kx, k0, k1, kg, kb, k2, k3, k4, k5 = jax.random.split(key, 9)

    # Deterministic parameters (shapes from the module's __init__); gamma/beta perturbed away
    # from the trivial 1/0 init so the BN affine path is actually exercised by the check.
    wc = jax.random.normal(k0, (COUT, CIN), dtype=jnp.float32) * 0.05     # Conv2d(256,4,1) weight
    bc = jax.random.normal(k1, (COUT,), dtype=jnp.float32) * 0.05         # conv bias (ref only)
    gamma = 1.0 + 0.1 * jax.random.normal(kg, (COUT,), dtype=jnp.float32) # BN weight
    beta = 0.1 * jax.random.normal(kb, (COUT,), dtype=jnp.float32)        # BN bias
    w1 = jax.random.normal(k2, (HID, HID), dtype=jnp.float32) * 0.05      # fc1 weight [256,256]
    b1 = jax.random.normal(k3, (HID,), dtype=jnp.float32) * 0.05          # fc1 bias
    w2 = jax.random.normal(k4, (1, HID), dtype=jnp.float32) * 0.05        # fc2 weight [1,256]
    b2 = jax.random.normal(k5, (1,), dtype=jnp.float32) * 0.05            # fc2 bias

    # One packed [8, 256] f32 tile for every small parameter (single DMA descriptor).
    packed = jnp.zeros((8, HID), dtype=jnp.float32)
    packed = packed.at[0:COUT, 0].set(gamma)
    packed = packed.at[0:COUT, 1].set(beta)
    packed = packed.at[COUT, :].set(b1)
    packed = packed.at[COUT + 1, :].set(w2[0])
    packed = packed.at[COUT + 2, 0].set(b2[0])

    params = dict(
        wc=wc.astype(MXU_DTYPE),          # [COUT, CIN] channel-major conv weight
        packed=packed,                    # [8, HID] gamma|beta / b1 / w2 / b2
        w1_t=w1.T.astype(MXU_DTYPE),      # [HID(in, torch flatten order), HID(out)]
        # conv bias bc intentionally NOT passed: training-mode BN cancels it exactly.
    )

    x = jax.random.normal(kx, (B, CIN, H, W), dtype=jnp.float32)

    fwd = jax.jit(value_head_forward)
    out = jax.block_until_ready(fwd(x, params))

    ref = reference_forward(x, (wc, bc, gamma, beta, w1, b1, w2, b2))
    tol = 1e-3 if MXU_DTYPE == jnp.float32 else 2e-2   # bf16 MXU operands loosen the comparison
    assert out.shape == (B, 1)
    assert jnp.allclose(out, ref, atol=tol, rtol=tol), (out, ref)

    print("KERNEL_OK")
</pallas_src>

<mosaic_0001>
module attributes {stable_mosaic.version = 11 : i64} {
  func.func @value_head_kernel(%arg0: memref<2x256x64xf32, #tpu.memory_space<vmem>>, %arg1: memref<4x256xf32, #tpu.memory_space<vmem>>, %arg2: memref<8x256xf32, #tpu.memory_space<vmem>>, %arg3: memref<256x256xf32, #tpu.memory_space<vmem>>, %arg4: memref<2x1xf32, #tpu.memory_space<vmem>>) attributes {dimension_semantics = [], scalar_prefetch = 0 : i64, scratch_operands = 0 : i64, tpu.core_type = #tpu.core_type<tc>} {
    %c0 = arith.constant 0 : index
    %c0_0 = arith.constant 0 : index
    %0 = vector.load %arg1[%c0, %c0_0] : memref<4x256xf32, #tpu.memory_space<vmem>>, vector<4x256xf32>
    %c0_1 = arith.constant 0 : index
    %c0_2 = arith.constant 0 : index
    %c0_3 = arith.constant 0 : index
    %1 = vector.load %arg0[%c0_1, %c0_2, %c0_3] : memref<2x256x64xf32, #tpu.memory_space<vmem>>, vector<1x256x64xf32>
    %2 = vector.shape_cast %1 : vector<1x256x64xf32> to vector<256x64xf32>
    %cst = arith.constant dense<0.000000e+00> : vector<4x64xf32>
    %3 = tpu.matmul %0, %2, %cst {dimension_numbers = #tpu.dot_dimension_numbers<[1], [0], [0], [1], [0, 0, 1, 1], [], []>} : vector<4x256xf32>, vector<256x64xf32>, vector<4x64xf32> -> vector<4x64xf32>
    %c1 = arith.constant 1 : index
    %c0_4 = arith.constant 0 : index
    %c0_5 = arith.constant 0 : index
    %4 = vector.load %arg0[%c1, %c0_4, %c0_5] : memref<2x256x64xf32, #tpu.memory_space<vmem>>, vector<1x256x64xf32>
    %5 = vector.shape_cast %4 : vector<1x256x64xf32> to vector<256x64xf32>
    %cst_6 = arith.constant dense<0.000000e+00> : vector<4x64xf32>
    %6 = tpu.matmul %0, %5, %cst_6 {dimension_numbers = #tpu.dot_dimension_numbers<[1], [0], [0], [1], [0, 0, 1, 1], [], []>} : vector<4x256xf32>, vector<256x64xf32>, vector<4x64xf32> -> vector<4x64xf32>
    %7 = tpu.concatenate %3, %6 in 1 : vector<4x64xf32>, vector<4x64xf32> -> vector<4x128xf32>
    %cst_7 = arith.constant dense<0.000000e+00> : vector<4xf32>
    %8 = vector.multi_reduction <add>, %7, %cst_7 [1] : vector<4x128xf32> to vector<4xf32>
    %9 = vector.shape_cast %8 : vector<4xf32> to vector<4x1xf32>
    %cst_8 = arith.constant 7.812500e-03 : f32
    %10 = vector.broadcast %cst_8 : f32 to vector<4x1xf32>
    %11 = arith.mulf %9, %10 : vector<4x1xf32>
    %12 = arith.mulf %7, %7 : vector<4x128xf32>
    %cst_9 = arith.constant dense<0.000000e+00> : vector<4xf32>
    %13 = vector.multi_reduction <add>, %12, %cst_9 [1] : vector<4x128xf32> to vector<4xf32>
    %14 = vector.shape_cast %13 : vector<4xf32> to vector<4x1xf32>
    %cst_10 = arith.constant 7.812500e-03 : f32
    %15 = vector.broadcast %cst_10 : f32 to vector<4x1xf32>
    %16 = arith.mulf %14, %15 : vector<4x1xf32>
    %17 = arith.mulf %11, %11 : vector<4x1xf32>
    %18 = arith.subf %16, %17 : vector<4x1xf32>
    %c0_11 = arith.constant 0 : index
    %c0_12 = arith.constant 0 : index
    %19 = vector.load %arg2[%c0_11, %c0_12] : memref<8x256xf32, #tpu.memory_space<vmem>>, vector<4x1xf32>
    %c0_13 = arith.constant 0 : index
    %c1_14 = arith.constant 1 : index
    %20 = vector.load %arg2[%c0_13, %c1_14] : memref<8x256xf32, #tpu.memory_space<vmem>>, vector<4x1xf32>
    %cst_15 = arith.constant 9.99999974E-6 : f32
    %21 = vector.broadcast %cst_15 : f32 to vector<4x1xf32>
    %22 = arith.addf %18, %21 : vector<4x1xf32>
    %23 = math.rsqrt %22 : vector<4x1xf32>
    %24 = arith.mulf %19, %23 : vector<4x1xf32>
    %25 = arith.mulf %24, %11 : vector<4x1xf32>
    %26 = arith.subf %20, %25 : vector<4x1xf32>
    %27 = vector.broadcast %24 : vector<4x1xf32> to vector<4x128xf32>
    %28 = arith.mulf %27, %7 : vector<4x128xf32>
    %29 = vector.broadcast %26 : vector<4x1xf32> to vector<4x128xf32>
    %30 = arith.addf %28, %29 : vector<4x128xf32>
    %cst_16 = arith.constant 0.000000e+00 : f32
    %31 = vector.broadcast %cst_16 : f32 to vector<4x128xf32>
    %32 = arith.maximumf %30, %31 : vector<4x128xf32>
    %33 = vector.extract_strided_slice %32 {offsets = [0, 0], sizes = [1, 64], strides = [1, 1]} : vector<4x128xf32> to vector<1x64xf32>
    %34 = vector.extract_strided_slice %32 {offsets = [1, 0], sizes = [1, 64], strides = [1, 1]} : vector<4x128xf32> to vector<1x64xf32>
    %35 = vector.extract_strided_slice %32 {offsets = [2, 0], sizes = [1, 64], strides = [1, 1]} : vector<4x128xf32> to vector<1x64xf32>
    %36 = vector.extract_strided_slice %32 {offsets = [3, 0], sizes = [1, 64], strides = [1, 1]} : vector<4x128xf32> to vector<1x64xf32>
    %37 = tpu.concatenate %33, %34, %35, %36 in 1 : vector<1x64xf32>, vector<1x64xf32>, vector<1x64xf32>, vector<1x64xf32> -> vector<1x256xf32>
    %38 = vector.extract_strided_slice %32 {offsets = [0, 64], sizes = [1, 64], strides = [1, 1]} : vector<4x128xf32> to vector<1x64xf32>
    %39 = vector.extract_strided_slice %32 {offsets = [1, 64], sizes = [1, 64], strides = [1, 1]} : vector<4x128xf32> to vector<1x64xf32>
    %40 = vector.extract_strided_slice %32 {offsets = [2, 64], sizes = [1, 64], strides = [1, 1]} : vector<4x128xf32> to vector<1x64xf32>
    %41 = vector.extract_strided_slice %32 {offsets = [3, 64], sizes = [1, 64], strides = [1, 1]} : vector<4x128xf32> to vector<1x64xf32>
    %42 = tpu.concatenate %38, %39, %40, %41 in 1 : vector<1x64xf32>, vector<1x64xf32>, vector<1x64xf32>, vector<1x64xf32> -> vector<1x256xf32>
    %43 = tpu.concatenate %37, %42 in 0 : vector<1x256xf32>, vector<1x256xf32> -> vector<2x256xf32>
    %c4 = arith.constant 4 : index
    %c0_17 = arith.constant 0 : index
    %44 = vector.load %arg2[%c4, %c0_17] : memref<8x256xf32, #tpu.memory_space<vmem>>, vector<1x256xf32>
    %c0_18 = arith.constant 0 : index
    %c0_19 = arith.constant 0 : index
    %45 = vector.load %arg3[%c0_18, %c0_19] : memref<256x256xf32, #tpu.memory_space<vmem>>, vector<256x256xf32>
    %cst_20 = arith.constant dense<0.000000e+00> : vector<2x256xf32>
    %46 = tpu.matmul %43, %45, %cst_20 {dimension_numbers = #tpu.dot_dimension_numbers<[1], [0], [0], [1], [0, 0, 1, 1], [], []>} : vector<2x256xf32>, vector<256x256xf32>, vector<2x256xf32> -> vector<2x256xf32>
    %47 = vector.broadcast %44 : vector<1x256xf32> to vector<2x256xf32>
    %48 = arith.addf %46, %47 : vector<2x256xf32>
    %c5 = arith.constant 5 : index
    %c0_21 = arith.constant 0 : index
    %49 = vector.load %arg2[%c5, %c0_21] : memref<8x256xf32, #tpu.memory_space<vmem>>, vector<1x256xf32>
    %c6 = arith.constant 6 : index
    %c0_22 = arith.constant 0 : index
    %50 = vector.load %arg2[%c6, %c0_22] : memref<8x256xf32, #tpu.memory_space<vmem>>, vector<1x1xf32>
    %51 = vector.broadcast %49 : vector<1x256xf32> to vector<2x256xf32>
    %52 = arith.mulf %48, %51 : vector<2x256xf32>
    %cst_23 = arith.constant dense<0.000000e+00> : vector<2xf32>
    %53 = vector.multi_reduction <add>, %52, %cst_23 [1] : vector<2x256xf32> to vector<2xf32>
    %54 = vector.shape_cast %53 : vector<2xf32> to vector<2x1xf32>
    %55 = vector.broadcast %50 : vector<1x1xf32> to vector<2x1xf32>
    %56 = arith.addf %54, %55 : vector<2x1xf32>
    %c0_24 = arith.constant 0 : index
    %c0_25 = arith.constant 0 : index
    %57 = vector.load %arg4[%c0_24, %c0_25] : memref<2x1xf32, #tpu.memory_space<vmem>>, vector<2x1xf32>
    tpu.vector_store %arg4[%c0_24, %c0_25], %56 {strides = array<i32>} : memref<2x1xf32, #tpu.memory_space<vmem>>, vector<2x1xf32>,
    return
  }
}

</mosaic_0001>

<llo_original>
// kernel: value_head_forward.1
$region0: #{value_head_forward.1}
  #allocation0 [shape = 'u32[]', space=smem, size = 0x4, offset = 0x4, fixed_abs, tag = 'smem constant byte address 0x4 - core index']
  #allocation1 [shape = 'u32[72,128]{1,0:T(1,128)}', space=vmem, size = 0x9000, scoped, tag = 'internal scratch']
  %s0 = inlined_call_operand.vmem [shape: f32[2,256,64], index: 0, kind: input, shape index: {}]
  %s1 = inlined_call_operand.vmem [shape: f32[4,256], index: 1, kind: input, shape index: {}]
  %s2 = inlined_call_operand.vmem [shape: f32[8,256], index: 2, kind: input, shape index: {}]
  %s3 = inlined_call_operand.vmem [shape: f32[256,256], index: 3, kind: input, shape index: {}]
  %s4 = inlined_call_operand.vmem [shape: f32[2,1], index: 4, kind: output, shape index: {}]
  %s5 = sld [smem:[#allocation0]]
  $region26: #{value_head_forward.1} parent=0
    _
  %s7 = ssub.s32 1, %s5
  %s8 = scalar_select 0, %s7, %s5
  // Predicated region
  $region2: #{value_head_forward.1} parent=0 // pred_check
    _
  $region3: #{value_head_forward.1} parent=0 // pred_check_branch
    %10 = sbr.rel (0) target = $region5
  $region4: #{value_head_forward.1} parent=0 // pred_region
    _
  $region5: #{value_head_forward.1} parent=0 // pred_fallthru
    _
  // Predicated region
  $region6: #{value_head_forward.1} parent=0 // pred_check
    _
  $region7: #{value_head_forward.1} parent=0 // pred_check_branch
    %12 = sbr.rel (0) target = $region9
  $region8: #{value_head_forward.1} parent=0 // pred_region
    _
  $region9: #{value_head_forward.1} parent=0 // pred_fallthru
    _
  // Predicated region
  $region10: #{value_head_forward.1} parent=0 // pred_check
    _
  $region11: #{value_head_forward.1} parent=0 // pred_check_branch
    %14 = sbr.rel (0) target = $region13
  $region12: #{value_head_forward.1} parent=0 // pred_region
    _
  $region13: #{value_head_forward.1} parent=0 // pred_fallthru
    _
  // Predicated region
  $region14: #{value_head_forward.1} parent=0 // pred_check
    _
  $region15: #{value_head_forward.1} parent=0 // pred_check_branch
    %16 = sbr.rel (0) target = $region17
  $region16: #{value_head_forward.1} parent=0 // pred_region
    _
  $region17: #{value_head_forward.1} parent=0 // pred_fallthru
    _
  %v17 = vld [vmem:[%s1] sm:$0xff]
  %v18 = vld [vmem:[%s0] sm:$0xff]
  %v19 = vld [vmem:[%s0 + $0x8] sm:$0xff]
  %v20 = vld [vmem:[%s0 + $0x10] sm:$0xff]
  %v21 = vld [vmem:[%s0 + $0x18] sm:$0xff]
  %v22 = vld [vmem:[%s0 + $0x20] sm:$0xff]
  %v23 = vld [vmem:[%s0 + $0x28] sm:$0xff]
  %v24 = vld [vmem:[%s0 + $0x30] sm:$0xff]
  %v25 = vld [vmem:[%s0 + $0x38] sm:$0xff]
  %v26 = vld [vmem:[%s0 + $0x40] sm:$0xff]
  %v27 = vld [vmem:[%s0 + $0x48] sm:$0xff]
  %v28 = vld [vmem:[%s0 + $0x50] sm:$0xff]
  %v29 = vld [vmem:[%s0 + $0x58] sm:$0xff]
  %v30 = vld [vmem:[%s0 + $0x60] sm:$0xff]
  %v31 = vld [vmem:[%s0 + $0x68] sm:$0xff]
  %v32 = vld [vmem:[%s0 + $0x70] sm:$0xff]
  %v33 = vld [vmem:[%s0 + $0x78] sm:$0xff]
  %v34 = vld [vmem:[%s0 + $0x80] sm:$0xff]
  %v35 = vld [vmem:[%s0 + $0x88] sm:$0xff]
  %v36 = vld [vmem:[%s0 + $0x90] sm:$0xff]
  %v37 = vld [vmem:[%s0 + $0x98] sm:$0xff]
  %v38 = vld [vmem:[%s0 + $0xa0] sm:$0xff]
  %v39 = vld [vmem:[%s0 + $0xa8] sm:$0xff]
  %v40 = vld [vmem:[%s0 + $0xb0] sm:$0xff]
  %v41 = vld [vmem:[%s0 + $0xb8] sm:$0xff]
  %v42 = vld [vmem:[%s0 + $0xc0] sm:$0xff]
  %v43 = vld [vmem:[%s0 + $0xc8] sm:$0xff]
  %v44 = vld [vmem:[%s0 + $0xd0] sm:$0xff]
  %v45 = vld [vmem:[%s0 + $0xd8] sm:$0xff]
  %v46 = vld [vmem:[%s0 + $0xe0] sm:$0xff]
  %v47 = vld [vmem:[%s0 + $0xe8] sm:$0xff]
  %v48 = vld [vmem:[%s0 + $0xf0] sm:$0xff]
  %v49 = vld [vmem:[%s0 + $0xf8] sm:$0xff]
  %51 = vst [vmem:[#allocation1] ss:$2 sm:$0xff] %v17
  %v52 = vld.sshfl [vmem:[#allocation1] sm:$0xff pattern:$0x75316420]
  %v53 = vld.sshfl [vmem:[#allocation1 + $0x8] sm:$0xff pattern:$0x75316420]
  %56 = vmatpush.msra.mxu0 %v33
  %57 = vmatpush.msra.mxu0 %v32
  %58 = vmatpush.msra.mxu0 %v31
  %59 = vmatpush.msra.mxu0 %v30
  %60 = vmatpush.msra.mxu0 %v29
  %61 = vmatpush.msra.mxu0 %v28
  %62 = vmatpush.msra.mxu0 %v27
  %63 = vmatpush.msra.mxu0 %v26
  %64 = vmatpush.msra.mxu0 %v25
  %65 = vmatpush.msra.mxu0 %v24
  %66 = vmatpush.msra.mxu0 %v23
  %67 = vmatpush.msra.mxu0 %v22
  %68 = vmatpush.msra.mxu0 %v21
  %69 = vmatpush.msra.mxu0 %v20
  %70 = vmatpush.msra.mxu0 %v19
  %71 = vmatpush.msra.mxu0 %v18
  %72 = vmatmul.f32.gmra.mxu0 %v52
  %v73 = vpop.f32.mrf.mxu0
  %v74 = vadd.f32 0.0, %v73
  %75 = vdwg.mxu0
  %76 = vmatpush.msra.mxu0 %v49
  %77 = vmatpush.msra.mxu0 %v48
  %78 = vmatpush.msra.mxu0 %v47
  %79 = vmatpush.msra.mxu0 %v46
  %80 = vmatpush.msra.mxu0 %v45
  %81 = vmatpush.msra.mxu0 %v44
  %82 = vmatpush.msra.mxu0 %v43
  %83 = vmatpush.msra.mxu0 %v42
  %84 = vmatpush.msra.mxu0 %v41
  %85 = vmatpush.msra.mxu0 %v40
  %86 = vmatpush.msra.mxu0 %v39
  %87 = vmatpush.msra.mxu0 %v38
  %88 = vmatpush.msra.mxu0 %v37
  %89 = vmatpush.msra.mxu0 %v36
  %90 = vmatpush.msra.mxu0 %v35
  %91 = vmatpush.msra.mxu0 %v34
  %92 = vmatmul.f32.gmra.mxu0 %v53
  %v93 = vpop.f32.mrf.mxu0
  %v94 = vadd.f32 %v74, %v93
  %95 = vdwg.mxu0
  %s96 = scalar_lea.vmem %s0, 256
  %v97 = vld [vmem:[%s96] sm:$0xff]
  %v98 = vld [vmem:[%s96 + $0x8] sm:$0xff]
  %v99 = vld [vmem:[%s96 + $0x10] sm:$0xff]
  %v100 = vld [vmem:[%s96 + $0x18] sm:$0xff]
  %v101 = vld [vmem:[%s96 + $0x20] sm:$0xff]
  %v102 = vld [vmem:[%s96 + $0x28] sm:$0xff]
  %v103 = vld [vmem:[%s96 + $0x30] sm:$0xff]
  %v104 = vld [vmem:[%s96 + $0x38] sm:$0xff]
  %v105 = vld [vmem:[%s96 + $0x40] sm:$0xff]
  %v106 = vld [vmem:[%s96 + $0x48] sm:$0xff]
  %v107 = vld [vmem:[%s96 + $0x50] sm:$0xff]
  %v108 = vld [vmem:[%s96 + $0x58] sm:$0xff]
  %v109 = vld [vmem:[%s96 + $0x60] sm:$0xff]
  %v110 = vld [vmem:[%s96 + $0x68] sm:$0xff]
  %v111 = vld [vmem:[%s96 + $0x70] sm:$0xff]
  %v112 = vld [vmem:[%s96 + $0x78] sm:$0xff]
  %v113 = vld [vmem:[%s96 + $0x80] sm:$0xff]
  %v114 = vld [vmem:[%s96 + $0x88] sm:$0xff]
  %v115 = vld [vmem:[%s96 + $0x90] sm:$0xff]
  %v116 = vld [vmem:[%s96 + $0x98] sm:$0xff]
  %v117 = vld [vmem:[%s96 + $0xa0] sm:$0xff]
  %v118 = vld [vmem:[%s96 + $0xa8] sm:$0xff]
  %v119 = vld [vmem:[%s96 + $0xb0] sm:$0xff]
  %v120 = vld [vmem:[%s96 + $0xb8] sm:$0xff]
  %v121 = vld [vmem:[%s96 + $0xc0] sm:$0xff]
  %v122 = vld [vmem:[%s96 + $0xc8] sm:$0xff]
  %v123 = vld [vmem:[%s96 + $0xd0] sm:$0xff]
  %v124 = vld [vmem:[%s96 + $0xd8] sm:$0xff]
  %v125 = vld [vmem:[%s96 + $0xe0] sm:$0xff]
  %v126 = vld [vmem:[%s96 + $0xe8] sm:$0xff]
  %v127 = vld [vmem:[%s96 + $0xf0] sm:$0xff]
  %v128 = vld [vmem:[%s96 + $0xf8] sm:$0xff]
  %129 = vst [vmem:[#allocation1] ss:$2 sm:$0xff] %v17
  %v130 = vld.sshfl [vmem:[#allocation1] sm:$0xff pattern:$0x75316420]
  %v131 = vld.sshfl [vmem:[#allocation1 + $0x8] sm:$0xff pattern:$0x75316420]
  %134 = vmatpush.msra.mxu0 %v112
  %135 = vmatpush.msra.mxu0 %v111
  %136 = vmatpush.msra.mxu0 %v110
  %137 = vmatpush.msra.mxu0 %v109
  %138 = vmatpush.msra.mxu0 %v108
  %139 = vmatpush.msra.mxu0 %v107
  %140 = vmatpush.msra.mxu0 %v106
  %141 = vmatpush.msra.mxu0 %v105
  %142 = vmatpush.msra.mxu0 %v104
  %143 = vmatpush.msra.mxu0 %v103
  %144 = vmatpush.msra.mxu0 %v102
  %145 = vmatpush.msra.mxu0 %v101
  %146 = vmatpush.msra.mxu0 %v100
  %147 = vmatpush.msra.mxu0 %v99
  %148 = vmatpush.msra.mxu0 %v98
  %149 = vmatpush.msra.mxu0 %v97
  %150 = vmatmul.f32.gmra.mxu0 %v130
  %v151 = vpop.f32.mrf.mxu0
  %v152 = vadd.f32 0.0, %v151
  %153 = vdwg.mxu0
  %154 = vmatpush.msra.mxu0 %v128
  %155 = vmatpush.msra.mxu0 %v127
  %156 = vmatpush.msra.mxu0 %v126
  %157 = vmatpush.msra.mxu0 %v125
  %158 = vmatpush.msra.mxu0 %v124
  %159 = vmatpush.msra.mxu0 %v123
  %160 = vmatpush.msra.mxu0 %v122
  %161 = vmatpush.msra.mxu0 %v121
  %162 = vmatpush.msra.mxu0 %v120
  %163 = vmatpush.msra.mxu0 %v119
  %164 = vmatpush.msra.mxu0 %v118
  %165 = vmatpush.msra.mxu0 %v117
  %166 = vmatpush.msra.mxu0 %v116
  %167 = vmatpush.msra.mxu0 %v115
  %168 = vmatpush.msra.mxu0 %v114
  %169 = vmatpush.msra.mxu0 %v113
  %170 = vmatmul.f32.gmra.mxu0 %v131
  %v171 = vpop.f32.mrf.mxu0
  %v172 = vadd.f32 %v152, %v171
  %173 = vdwg.mxu0
  %175 = vrot.lane.b32.xlu0 %v172, 64
  %v176 = vpop.permute.xlu0 %175
  %vm178 = vcmask 523264
  %v179 = vsel %vm178, %v94, %v176
  %vm180 = vcmask 1043456
  %v181 = vsel %vm180, %v179, 0.0
  %182 = vadd.xlane.f32.xlu0 %v181
  %v183 = vpop.xlane.xlu0 %182
  %v184 = vmul.f32 %v183, 0.0078125
  %v185 = vmul.f32 %v179, %v179
  %v186 = vsel %vm180, %v185, 0.0
  %187 = vadd.xlane.f32.xlu0 %v186
  %v188 = vpop.xlane.xlu0 %187
  %v189 = vmul.f32 %v188, 0.0078125
  %v190 = vmul.f32 %v184, %v184
  %v191 = vsub.f32 %v189, %v190
  %v192 = vld [vmem:[%s2] sm:$0xf]
  %v193 = vadd.f32 %v191, 1e-05
  %v194 = vrsqrt.pop %v193
  %v195 = vmul.f32 %v194, %v193
  %v196 = vmul.f32 %v195, %v194
  %v197 = vmul.f32 0.5, %v196
  %v198 = vsub.f32 1.5, %v197
  %v199 = vmul.f32 %v194, %v198
  %vm200 = vweird.f32 %v193
  %vm201 = vweird.f32 %v194
  %vm202 = vmor %vm200, %vm201
  %v203 = vsel %vm202, %v194, %v199
  %v204 = vmul.f32 %v192, %v203
  %v205 = vmul.f32 %v204, %v184
  %207 = vrot.lane.b32.xlu0 %v205, 1
  %v208 = vpop.permute.xlu0 %207
  %v210 = vsub.f32 %v192, %v208
  %212 = vset.pattern.permute.xlu0 0
  %213 = vperm.xlu0 %212, %v204
  %v214 = vpop.permute.xlu0 %213
  %v216 = vmul.f32 %v214, %v179
  %218 = vset.pattern.permute.xlu0 1
  %219 = vperm.xlu0 %218, %v210
  %v220 = vpop.permute.xlu0 %219
  %v222 = vadd.f32 %v216, %v220
  %v223 = vmax.f32 %v222, 0.0
  %v225 = vrot.slane %v223, 1
  %226 = vrot.lane.b32.xlu0 %v225, 64
  %v227 = vpop.permute.xlu0 %226
  %v229 = vrot.slane %v223, 2
  %v231 = vrot.slane %v223, 3
  %232 = vrot.lane.b32.xlu0 %v231, 64
  %v233 = vpop.permute.xlu0 %232
  %v235 = vsel %vm178, %v223, %v227
  %v236 = vsel %vm178, %v229, %v233
  %237 = vrot.lane.b32.xlu0 %v223, 64
  %v238 = vpop.permute.xlu0 %237
  %241 = vrot.lane.b32.xlu0 %v229, 64
  %v242 = vpop.permute.xlu0 %241
  %v245 = vsel %vm178, %v238, %v225
  %v246 = vsel %vm178, %v242, %v231
  %v249 = vrot.slane %v245, 7
  %v250 = vrot.slane %v246, 7
  %vm253 = vcmask 1040384
  %v254 = vsel %vm253, %v235, %v249
  %v255 = vsel %vm253, %v236, %v250
  %s256 = scalar_lea.vmem %s2, 4
  %v257 = vld [vmem:[%s256] ss:$8 sm:$0x3]
  %v258 = vld [vmem:[%s3] sm:$0xff]
  %v259 = vld [vmem:[%s3 + $0x8] sm:$0xff]
  %v260 = vld [vmem:[%s3 + $0x10] sm:$0xff]
  %v261 = vld [vmem:[%s3 + $0x18] sm:$0xff]
  %v262 = vld [vmem:[%s3 + $0x20] sm:$0xff]
  %v263 = vld [vmem:[%s3 + $0x28] sm:$0xff]
  %v264 = vld [vmem:[%s3 + $0x30] sm:$0xff]
  %v265 = vld [vmem:[%s3 + $0x38] sm:$0xff]
  %v266 = vld [vmem:[%s3 + $0x40] sm:$0xff]
  %v267 = vld [vmem:[%s3 + $0x48] sm:$0xff]
  %v268 = vld [vmem:[%s3 + $0x50] sm:$0xff]
  %v269 = vld [vmem:[%s3 + $0x58] sm:$0xff]
  %v270 = vld [vmem:[%s3 + $0x60] sm:$0xff]
  %v271 = vld [vmem:[%s3 + $0x68] sm:$0xff]
  %v272 = vld [vmem:[%s3 + $0x70] sm:$0xff]
  %v273 = vld [vmem:[%s3 + $0x78] sm:$0xff]
  %v274 = vld [vmem:[%s3 + $0x80] sm:$0xff]
  %v275 = vld [vmem:[%s3 + $0x88] sm:$0xff]
  %v276 = vld [vmem:[%s3 + $0x90] sm:$0xff]
  %v277 = vld [vmem:[%s3 + $0x98] sm:$0xff]
  %v278 = vld [vmem:[%s3 + $0xa0] sm:$0xff]
  %v279 = vld [vmem:[%s3 + $0xa8] sm:$0xff]
  %v280 = vld [vmem:[%s3 + $0xb0] sm:$0xff]
  %v281 = vld [vmem:[%s3 + $0xb8] sm:$0xff]
  %v282 = vld [vmem:[%s3 + $0xc0] sm:$0xff]
  %v283 = vld [vmem:[%s3 + $0xc8] sm:$0xff]
  %v284 = vld [vmem:[%s3 + $0xd0] sm:$0xff]
  %v285 = vld [vmem:[%s3 + $0xd8] sm:$0xff]
  %v286 = vld [vmem:[%s3 + $0xe0] sm:$0xff]
  %v287 = vld [vmem:[%s3 + $0xe8] sm:$0xff]
  %v288 = vld [vmem:[%s3 + $0xf0] sm:$0xff]
  %v289 = vld [vmem:[%s3 + $0xf8] sm:$0xff]
  %v290 = vld [vmem:[%s3 + $0x100] sm:$0xff]
  %v291 = vld [vmem:[%s3 + $0x108] sm:$0xff]
  %v292 = vld [vmem:[%s3 + $0x110] sm:$0xff]
  %v293 = vld [vmem:[%s3 + $0x118] sm:$0xff]
  %v294 = vld [vmem:[%s3 + $0x120] sm:$0xff]
  %v295 = vld [vmem:[%s3 + $0x128] sm:$0xff]
  %v296 = vld [vmem:[%s3 + $0x130] sm:$0xff]
  %v297 = vld [vmem:[%s3 + $0x138] sm:$0xff]
  %v298 = vld [vmem:[%s3 + $0x140] sm:$0xff]
  %v299 = vld [vmem:[%s3 + $0x148] sm:$0xff]
  %v300 = vld [vmem:[%s3 + $0x150] sm:$0xff]
  %v301 = vld [vmem:[%s3 + $0x158] sm:$0xff]
  %v302 = vld [vmem:[%s3 + $0x160] sm:$0xff]
  %v303 = vld [vmem:[%s3 + $0x168] sm:$0xff]
  %v304 = vld [vmem:[%s3 + $0x170] sm:$0xff]
  %v305 = vld [vmem:[%s3 + $0x178] sm:$0xff]
  %v306 = vld [vmem:[%s3 + $0x180] sm:$0xff]
  %v307 = vld [vmem:[%s3 + $0x188] sm:$0xff]
  %v308 = vld [vmem:[%s3 + $0x190] sm:$0xff]
  %v309 = vld [vmem:[%s3 + $0x198] sm:$0xff]
  %v310 = vld [vmem:[%s3 + $0x1a0] sm:$0xff]
  %v311 = vld [vmem:[%s3 + $0x1a8] sm:$0xff]
  %v312 = vld [vmem:[%s3 + $0x1b0] sm:$0xff]
  %v313 = vld [vmem:[%s3 + $0x1b8] sm:$0xff]
  %v314 = vld [vmem:[%s3 + $0x1c0] sm:$0xff]
  %v315 = vld [vmem:[%s3 + $0x1c8] sm:$0xff]
  %v316 = vld [vmem:[%s3 + $0x1d0] sm:$0xff]
  %v317 = vld [vmem:[%s3 + $0x1d8] sm:$0xff]
  %v318 = vld [vmem:[%s3 + $0x1e0] sm:$0xff]
  %v319 = vld [vmem:[%s3 + $0x1e8] sm:$0xff]
  %v320 = vld [vmem:[%s3 + $0x1f0] sm:$0xff]
  %v321 = vld [vmem:[%s3 + $0x1f8] sm:$0xff]
  %v323 = vperm.slane %v257, 0
  %v324 = vperm.slane %v257, 1
  %327 = vmatpush.msra.mxu0 %v288
  %328 = vmatpush.msra.mxu0 %v286
  %329 = vmatpush.msra.mxu0 %v284
  %330 = vmatpush.msra.mxu0 %v282
  %331 = vmatpush.msra.mxu0 %v280
  %332 = vmatpush.msra.mxu0 %v278
  %333 = vmatpush.msra.mxu0 %v276
  %334 = vmatpush.msra.mxu0 %v274
  %335 = vmatpush.msra.mxu0 %v272
  %336 = vmatpush.msra.mxu0 %v270
  %337 = vmatpush.msra.mxu0 %v268
  %338 = vmatpush.msra.mxu0 %v266
  %339 = vmatpush.msra.mxu0 %v264
  %340 = vmatpush.msra.mxu0 %v262
  %341 = vmatpush.msra.mxu0 %v260
  %342 = vmatpush.msra.mxu0 %v258
  %343 = vmatmul.f32.gmra.mxu0 %v254
  %v344 = vpop.f32.mrf.mxu0
  %v345 = vadd.f32 %v323, %v344
  %346 = vdwg.mxu0
  %347 = vmatpush.msra.mxu0 %v320
  %348 = vmatpush.msra.mxu0 %v318
  %349 = vmatpush.msra.mxu0 %v316
  %350 = vmatpush.msra.mxu0 %v314
  %351 = vmatpush.msra.mxu0 %v312
  %352 = vmatpush.msra.mxu0 %v310
  %353 = vmatpush.msra.mxu0 %v308
  %354 = vmatpush.msra.mxu0 %v306
  %355 = vmatpush.msra.mxu0 %v304
  %356 = vmatpush.msra.mxu0 %v302
  %357 = vmatpush.msra.mxu0 %v300
  %358 = vmatpush.msra.mxu0 %v298
  %359 = vmatpush.msra.mxu0 %v296
  %360 = vmatpush.msra.mxu0 %v294
  %361 = vmatpush.msra.mxu0 %v292
  %362 = vmatpush.msra.mxu0 %v290
  %363 = vmatmul.f32.gmra.mxu0 %v255
  %v364 = vpop.f32.mrf.mxu0
  %v365 = vadd.f32 %v345, %v364
  %366 = vdwg.mxu0
  %367 = vmatpush.msra.mxu0 %v289
  %368 = vmatpush.msra.mxu0 %v287
  %369 = vmatpush.msra.mxu0 %v285
  %370 = vmatpush.msra.mxu0 %v283
  %371 = vmatpush.msra.mxu0 %v281
  %372 = vmatpush.msra.mxu0 %v279
  %373 = vmatpush.msra.mxu0 %v277
  %374 = vmatpush.msra.mxu0 %v275
  %375 = vmatpush.msra.mxu0 %v273
  %376 = vmatpush.msra.mxu0 %v271
  %377 = vmatpush.msra.mxu0 %v269
  %378 = vmatpush.msra.mxu0 %v267
  %379 = vmatpush.msra.mxu0 %v265
  %380 = vmatpush.msra.mxu0 %v263
  %381 = vmatpush.msra.mxu0 %v261
  %382 = vmatpush.msra.mxu0 %v259
  %383 = vmatmul.f32.gmra.mxu0 %v254
  %v384 = vpop.f32.mrf.mxu0
  %v385 = vadd.f32 %v324, %v384
  %386 = vdwg.mxu0
  %387 = vmatpush.msra.mxu0 %v321
  %388 = vmatpush.msra.mxu0 %v319
  %389 = vmatpush.msra.mxu0 %v317
  %390 = vmatpush.msra.mxu0 %v315
  %391 = vmatpush.msra.mxu0 %v313
  %392 = vmatpush.msra.mxu0 %v311
  %393 = vmatpush.msra.mxu0 %v309
  %394 = vmatpush.msra.mxu0 %v307
  %395 = vmatpush.msra.mxu0 %v305
  %396 = vmatpush.msra.mxu0 %v303
  %397 = vmatpush.msra.mxu0 %v301
  %398 = vmatpush.msra.mxu0 %v299
  %399 = vmatpush.msra.mxu0 %v297
  %400 = vmatpush.msra.mxu0 %v295
  %401 = vmatpush.msra.mxu0 %v293
  %402 = vmatpush.msra.mxu0 %v291
  %403 = vmatmul.f32.gmra.mxu0 %v255
  %v404 = vpop.f32.mrf.mxu0
  %v405 = vadd.f32 %v385, %v404
  %406 = vdwg.mxu0
  %s407 = scalar_lea.vmem %s2, 5
  %v408 = vld [vmem:[%s407] ss:$8 sm:$0x3]
  %v409 = vld [vmem:[%s2 + $0x6] ss:$0 sm:$0xff]
  %v411 = vperm.slane %v408, 0
  %v412 = vperm.slane %v408, 1
  %v415 = vmul.f32 %v365, %v411
  %v416 = vmul.f32 %v405, %v412
  %vm417 = vcmask 1041408
  %v418 = vsel %vm417, %v415, 0.0
  %v419 = vsel %vm417, %v416, 0.0
  %v420 = vadd.f32 %v418, %v419
  %421 = vadd.xlane.f32.xlu0 %v420
  %v422 = vpop.xlane.xlu0 %421
  %v423 = vadd.f32 %v422, %v409
  %vm424 = vcmask 1024
  %425 = vst.msk [vmem:[%s4] sm:$0x3] %vm424, %v423
  // Predicated region
  $region18: #{value_head_forward.1} parent=0 // pred_check
    _
  $region19: #{value_head_forward.1} parent=0 // pred_check_branch
    %427 = sbr.rel (0) target = $region21
  $region20: #{value_head_forward.1} parent=0 // pred_region
    _
  $region21: #{value_head_forward.1} parent=0 // pred_fallthru
    _
  // Predicated region
  $region22: #{value_head_forward.1} parent=0 // pred_check
    _
  $region23: #{value_head_forward.1} parent=0 // pred_check_branch
    %429 = sbr.rel (0) target = $region25
  $region24: #{value_head_forward.1} parent=0 // pred_region
    _
  $region25: #{value_head_forward.1} parent=0 // pred_fallthru
    _

</llo_original>
